<compile_context>
chip_gen: v7x
topology: tpu7x:2x2x1
jax: 0.10.0
libtpu: 0.0.40
codegen_flags: <defaults>
</compile_context>

<pallas_src>
import jax
import jax.numpy as jnp
from jax.experimental import pallas as pl
from jax.experimental.pallas import tpu as pltpu

N_PAD = 128  # lane-dense padded width of the final (10-wide) output


def _round_up(n, m):
    return ((n + m - 1) // m) * m


def mlp_kernel(x_ref, w1_ref, b1_ref, w2_ref, b2_ref, w3_ref, b3_ref, o_ref):
    # x tile: (TB, 784) f32 -> cast to bf16 in-kernel (VPU has plenty of slack).
    x = x_ref[...].astype(jnp.bfloat16)
    h1 = jnp.dot(x, w1_ref[...], preferred_element_type=jnp.float32)         # (TB, 64) f32
    h1 = jnp.maximum(h1 + b1_ref[...], 0.0)                                   # bias+ReLU in f32
    h2 = jnp.dot(h1.astype(jnp.bfloat16), w2_ref[...],
                 preferred_element_type=jnp.float32)                          # (TB, 64) f32
    h2 = jnp.maximum(h2 + b2_ref[...], 0.0)
    out = jnp.dot(h2.astype(jnp.bfloat16), w3_ref[...],
                  preferred_element_type=jnp.float32)                         # (TB, 128) f32
    o_ref[...] = (out + b3_ref[...]).astype(o_ref.dtype)                      # bf16 lane-dense store


def prepare_params(params):
    """One-time parameter prep: pad layer-3 to 128 lanes, cast weights to bf16."""
    w1, b1, w2, b2, w3, b3 = params
    w3p = jnp.zeros((w3.shape[0], N_PAD), w3.dtype).at[:, : w3.shape[1]].set(w3)
    b3p = jnp.zeros((1, N_PAD), b3.dtype).at[:, : b3.shape[1]].set(b3)
    return (
        w1.astype(jnp.bfloat16), b1,            # biases stay f32
        w2.astype(jnp.bfloat16), b2,
        w3p.astype(jnp.bfloat16), b3p,
    )


def net_forward(x_nchw, prepared_params, *, tb=1024):
    """x_nchw: (B, 1, 28, 28) float32 -> (B, 10) float32 logits."""
    B = x_nchw.shape[0]
    # Row-major flatten, identical semantics to x.view(x.size(0), -1). No cast, no pad.
    x_flat = x_nchw.reshape(B, -1)
    K = x_flat.shape[1]  # 784
    w1b, b1, w2b, b2, w3b, b3p = prepared_params

    # Batch tile: multiple of 8 (f32 sublane tile). Keep >= 2 grid steps when
    # the batch is splittable so v7x can shard the "parallel" axis across TCs.
    TB = min(tb, max(8, _round_up(B, 8)))
    if B >= 16:
        TB = min(TB, max(8, _round_up(pl.cdiv(B, 2), 8)))
    grid = (pl.cdiv(B, TB),)

    # Only raise the scoped VMEM limit if the tile actually needs it (v5e
    # default is 16 MiB); cap well under v7x's 64 MiB physical VMEM.
    vmem_limit = (48 * 1024 * 1024) if TB > 1024 else None

    cost = pl.CostEstimate(
        flops=2 * B * (K * 64 + 64 * 64 + 64 * N_PAD),
        transcendentals=0,
        bytes_accessed=(B * K * 4                               # f32 input, streamed once
                        + (K * 64 + 64 * 64 + 64 * N_PAD) * 2   # bf16 weights (resident)
                        + (64 + 64 + N_PAD) * 4                 # f32 biases
                        + B * N_PAD * 2),                       # bf16 output
    )

    out = pl.pallas_call(
        mlp_kernel,
        out_shape=jax.ShapeDtypeStruct((B, N_PAD), jnp.bfloat16),
        grid=grid,
        in_specs=[
            pl.BlockSpec((TB, K), lambda i: (i, 0)),        # x tiles: streamed per grid step
            pl.BlockSpec((K, 64), lambda i: (0, 0)),        # w1: resident
            pl.BlockSpec((1, 64), lambda i: (0, 0)),        # b1: resident
            pl.BlockSpec((64, 64), lambda i: (0, 0)),       # w2: resident
            pl.BlockSpec((1, 64), lambda i: (0, 0)),        # b2: resident
            pl.BlockSpec((64, N_PAD), lambda i: (0, 0)),    # w3 (padded): resident
            pl.BlockSpec((1, N_PAD), lambda i: (0, 0)),     # b3 (padded): resident
        ],
        out_specs=pl.BlockSpec((TB, N_PAD), lambda i: (i, 0)),
        compiler_params=pltpu.CompilerParams(
            dimension_semantics=("parallel",),
            vmem_limit_bytes=vmem_limit,
        ),
        cost_estimate=cost,
    )(x_flat, w1b, b1, w2b, b2, w3b, b3p)

    # Drop the zero-padded logit lanes; return f32 logits.
    return out[:B, :10].astype(jnp.float32)


def init_params(key):
    """Deterministic init mimicking nn.Linear (uniform +/- 1/sqrt(fan_in))."""
    def linear(k, fan_in, fan_out):
        kw, kb = jax.random.split(k)
        bound = 1.0 / (fan_in ** 0.5)
        # stored as (in, out) so kernel computes x @ W
        w = jax.random.uniform(kw, (fan_in, fan_out), jnp.float32, -bound, bound)
        b = jax.random.uniform(kb, (1, fan_out), jnp.float32, -bound, bound)
        return w, b

    k1, k2, k3 = jax.random.split(key, 3)
    w1, b1 = linear(k1, 28 * 28, 64)
    w2, b2 = linear(k2, 64, 64)
    w3, b3 = linear(k3, 64, 10)
    return (w1, b1, w2, b2, w3, b3)


if __name__ == "__main__":
    key = jax.random.PRNGKey(0)
    kx, kp = jax.random.split(key)

    # Small MNIST-like batch: (B=2, C=1, H=28, W=28); 28*28 is fixed by the module.
    x = jax.random.normal(kx, (2, 1, 28, 28), dtype=jnp.float32)
    params = init_params(kp)
    prepared = jax.block_until_ready(prepare_params(params))  # one-time prep

    out = net_forward(x, prepared)
    out = jax.block_until_ready(out)
    assert out.shape == (2, 10)

    # Reference following the same mixed-precision path (bf16 matmul inputs,
    # f32 accumulation / bias / ReLU, bf16 output store) in plain JAX.
    w1, b1, w2, b2, w3, b3 = params
    xf = x.reshape(x.shape[0], -1)
    h = jnp.dot(xf.astype(jnp.bfloat16), w1.astype(jnp.bfloat16),
                preferred_element_type=jnp.float32)
    h = jnp.maximum(h + b1, 0.0)
    h = jnp.dot(h.astype(jnp.bfloat16), w2.astype(jnp.bfloat16),
                preferred_element_type=jnp.float32)
    h = jnp.maximum(h + b2, 0.0)
    ref = jnp.dot(h.astype(jnp.bfloat16), w3.astype(jnp.bfloat16),
                  preferred_element_type=jnp.float32) + b3
    ref = ref.astype(jnp.bfloat16).astype(jnp.float32)
    assert jnp.allclose(out, ref, atol=1e-2, rtol=1e-2)

    # Sanity vs. full-f32 math (looser, bounds the bf16 streaming error).
    ref32 = jnp.maximum(xf @ w1 + b1, 0.0)
    ref32 = jnp.maximum(ref32 @ w2 + b2, 0.0)
    ref32 = ref32 @ w3 + b3
    assert jnp.allclose(out, ref32, atol=1e-1, rtol=1e-1)

    print("KERNEL_OK")
</pallas_src>

<mosaic_0001>
module attributes {stable_mosaic.version = 11 : i64} {
  func.func @mlp_kernel(%arg0: i32, %arg1: memref<8x784xf32, #tpu.memory_space<vmem>>, %arg2: memref<784x64xbf16, #tpu.memory_space<vmem>>, %arg3: memref<1x64xf32, #tpu.memory_space<vmem>>, %arg4: memref<64x64xbf16, #tpu.memory_space<vmem>>, %arg5: memref<1x64xf32, #tpu.memory_space<vmem>>, %arg6: memref<64x128xbf16, #tpu.memory_space<vmem>>, %arg7: memref<1x128xf32, #tpu.memory_space<vmem>>, %arg8: memref<8x128xbf16, #tpu.memory_space<vmem>>) attributes {dimension_semantics = [#tpu.dimension_semantics<parallel>], iteration_bounds = array<i64: 1>, scalar_prefetch = 0 : i64, scratch_operands = 0 : i64, tpu.core_type = #tpu.core_type<tc>, window_params = [{transform_indices = @transform_0, window_bounds = array<i64: 8, 784>}, {pipeline_mode = #tpu.pipeline_mode<synchronous>, transform_indices = @transform_1, window_bounds = array<i64: 784, 64>}, {pipeline_mode = #tpu.pipeline_mode<synchronous>, transform_indices = @transform_2, window_bounds = array<i64: 1, 64>}, {pipeline_mode = #tpu.pipeline_mode<synchronous>, transform_indices = @transform_3, window_bounds = array<i64: 64, 64>}, {pipeline_mode = #tpu.pipeline_mode<synchronous>, transform_indices = @transform_4, window_bounds = array<i64: 1, 64>}, {pipeline_mode = #tpu.pipeline_mode<synchronous>, transform_indices = @transform_5, window_bounds = array<i64: 64, 128>}, {pipeline_mode = #tpu.pipeline_mode<synchronous>, transform_indices = @transform_6, window_bounds = array<i64: 1, 128>}, {transform_indices = @transform_7, window_bounds = array<i64: 8, 128>}]} {
    %c0 = arith.constant 0 : index
    %c0_0 = arith.constant 0 : index
    %0 = vector.load %arg1[%c0, %c0_0] : memref<8x784xf32, #tpu.memory_space<vmem>>, vector<8x784xf32>
    %1 = arith.truncf %0 : vector<8x784xf32> to vector<8x784xbf16>
    %c0_1 = arith.constant 0 : index
    %c0_2 = arith.constant 0 : index
    %2 = vector.load %arg2[%c0_1, %c0_2] : memref<784x64xbf16, #tpu.memory_space<vmem>>, vector<784x64xbf16>
    %cst = arith.constant dense<0.000000e+00> : vector<8x64xf32>
    %3 = tpu.matmul %1, %2, %cst {dimension_numbers = #tpu.dot_dimension_numbers<[1], [0], [0], [1], [0, 0, 1, 1], [], []>} : vector<8x784xbf16>, vector<784x64xbf16>, vector<8x64xf32> -> vector<8x64xf32>
    %c0_3 = arith.constant 0 : index
    %c0_4 = arith.constant 0 : index
    %4 = vector.load %arg3[%c0_3, %c0_4] : memref<1x64xf32, #tpu.memory_space<vmem>>, vector<1x64xf32>
    %5 = vector.broadcast %4 : vector<1x64xf32> to vector<8x64xf32>
    %6 = arith.addf %3, %5 : vector<8x64xf32>
    %cst_5 = arith.constant 0.000000e+00 : f32
    %7 = vector.broadcast %cst_5 : f32 to vector<8x64xf32>
    %8 = arith.maximumf %6, %7 : vector<8x64xf32>
    %9 = arith.truncf %8 : vector<8x64xf32> to vector<8x64xbf16>
    %c0_6 = arith.constant 0 : index
    %c0_7 = arith.constant 0 : index
    %10 = vector.load %arg4[%c0_6, %c0_7] : memref<64x64xbf16, #tpu.memory_space<vmem>>, vector<64x64xbf16>
    %cst_8 = arith.constant dense<0.000000e+00> : vector<8x64xf32>
    %11 = tpu.matmul %9, %10, %cst_8 {dimension_numbers = #tpu.dot_dimension_numbers<[1], [0], [0], [1], [0, 0, 1, 1], [], []>} : vector<8x64xbf16>, vector<64x64xbf16>, vector<8x64xf32> -> vector<8x64xf32>
    %c0_9 = arith.constant 0 : index
    %c0_10 = arith.constant 0 : index
    %12 = vector.load %arg5[%c0_9, %c0_10] : memref<1x64xf32, #tpu.memory_space<vmem>>, vector<1x64xf32>
    %13 = vector.broadcast %12 : vector<1x64xf32> to vector<8x64xf32>
    %14 = arith.addf %11, %13 : vector<8x64xf32>
    %cst_11 = arith.constant 0.000000e+00 : f32
    %15 = vector.broadcast %cst_11 : f32 to vector<8x64xf32>
    %16 = arith.maximumf %14, %15 : vector<8x64xf32>
    %17 = arith.truncf %16 : vector<8x64xf32> to vector<8x64xbf16>
    %c0_12 = arith.constant 0 : index
    %c0_13 = arith.constant 0 : index
    %18 = vector.load %arg6[%c0_12, %c0_13] : memref<64x128xbf16, #tpu.memory_space<vmem>>, vector<64x128xbf16>
    %cst_14 = arith.constant dense<0.000000e+00> : vector<8x128xf32>
    %19 = tpu.matmul %17, %18, %cst_14 {dimension_numbers = #tpu.dot_dimension_numbers<[1], [0], [0], [1], [0, 0, 1, 1], [], []>} : vector<8x64xbf16>, vector<64x128xbf16>, vector<8x128xf32> -> vector<8x128xf32>
    %c0_15 = arith.constant 0 : index
    %c0_16 = arith.constant 0 : index
    %20 = vector.load %arg7[%c0_15, %c0_16] : memref<1x128xf32, #tpu.memory_space<vmem>>, vector<1x128xf32>
    %21 = vector.broadcast %20 : vector<1x128xf32> to vector<8x128xf32>
    %22 = arith.addf %19, %21 : vector<8x128xf32>
    %23 = arith.truncf %22 : vector<8x128xf32> to vector<8x128xbf16>
    %c0_17 = arith.constant 0 : index
    %c0_18 = arith.constant 0 : index
    %24 = vector.load %arg8[%c0_17, %c0_18] : memref<8x128xbf16, #tpu.memory_space<vmem>>, vector<8x128xbf16>
    tpu.vector_store %arg8[%c0_17, %c0_18], %23 {strides = array<i32>} : memref<8x128xbf16, #tpu.memory_space<vmem>>, vector<8x128xbf16>,
    return
  }
  func.func @transform_0(%arg0: i32) -> (i32, i32) {
    %c0_i32 = arith.constant 0 : i32
    %c0_i32_0 = arith.constant 0 : i32
    return %arg0, %c0_i32 : i32, i32
  }
  func.func @transform_1(%arg0: i32) -> (i32, i32) {
    %c0_i32 = arith.constant 0 : i32
    %c0_i32_0 = arith.constant 0 : i32
    %c0_i32_1 = arith.constant 0 : i32
    return %c0_i32, %c0_i32_0 : i32, i32
  }
  func.func @transform_2(%arg0: i32) -> (i32, i32) {
    %c0_i32 = arith.constant 0 : i32
    %c0_i32_0 = arith.constant 0 : i32
    %c0_i32_1 = arith.constant 0 : i32
    return %c0_i32, %c0_i32_0 : i32, i32
  }
  func.func @transform_3(%arg0: i32) -> (i32, i32) {
    %c0_i32 = arith.constant 0 : i32
    %c0_i32_0 = arith.constant 0 : i32
    %c0_i32_1 = arith.constant 0 : i32
    return %c0_i32, %c0_i32_0 : i32, i32
  }
  func.func @transform_4(%arg0: i32) -> (i32, i32) {
    %c0_i32 = arith.constant 0 : i32
    %c0_i32_0 = arith.constant 0 : i32
    %c0_i32_1 = arith.constant 0 : i32
    return %c0_i32, %c0_i32_0 : i32, i32
  }
  func.func @transform_5(%arg0: i32) -> (i32, i32) {
    %c0_i32 = arith.constant 0 : i32
    %c0_i32_0 = arith.constant 0 : i32
    %c0_i32_1 = arith.constant 0 : i32
    return %c0_i32, %c0_i32_0 : i32, i32
  }
  func.func @transform_6(%arg0: i32) -> (i32, i32) {
    %c0_i32 = arith.constant 0 : i32
    %c0_i32_0 = arith.constant 0 : i32
    %c0_i32_1 = arith.constant 0 : i32
    return %c0_i32, %c0_i32_0 : i32, i32
  }
  func.func @transform_7(%arg0: i32) -> (i32, i32) {
    %c0_i32 = arith.constant 0 : i32
    %c0_i32_0 = arith.constant 0 : i32
    return %arg0, %c0_i32 : i32, i32
  }
}

</mosaic_0001>

<llo_original>
// kernel: tpu_custom_call.1
$region0: #{tpu_custom_call.1}
  #allocation0 [shape = 'u32[]', space=smem, size = 0x4, offset = 0x4, fixed_abs, tag = 'smem constant byte address 0x4 - core index']
  #allocation1 [shape = 'u32[144,128]{1,0:T(1,128)}', space=vmem, size = 0x12000, scoped, tag = 'internal scratch']
  %s0 = inlined_call_operand.vmem [shape: f32[2,784], index: 0, kind: input, shape index: {}]
  %s1 = inlined_call_operand.vmem [shape: bf16[784,64], index: 1, kind: input, shape index: {}]
  %s2 = inlined_call_operand.vmem [shape: f32[1,64], index: 2, kind: input, shape index: {}]
  %s3 = inlined_call_operand.vmem [shape: bf16[64,64], index: 3, kind: input, shape index: {}]
  %s4 = inlined_call_operand.vmem [shape: f32[1,64], index: 4, kind: input, shape index: {}]
  %s5 = inlined_call_operand.vmem [shape: bf16[64,128], index: 5, kind: input, shape index: {}]
  %s6 = inlined_call_operand.vmem [shape: f32[1,128], index: 6, kind: input, shape index: {}]
  %s7 = inlined_call_operand.hbm [shape: bf16[2,128], index: 7, kind: output, shape index: {}]
  %s8 = sld [smem:[#allocation0]]
  $region38: #{tpu_custom_call.1} parent=0
    _
  %s10 = ssub.s32 1, %s8
  %s11 = scalar_select 0, %s10, %s8
  $region1: #{tpu_custom_call.1} parent=0
    #allocation2 [shape = 'u8[2048]{0}', space=vmem, size = 0x800, scoped, tag = 'output window, operand 0, single buffered']
    #allocation3 [shape = 's32[1]{0}', space=sflag, size = 0x4, scoped, tag = 'scoped memory for tpu_custom_call.1']
    %12 = vsyncpa [#allocation3], 0
    // Predicated region
    $region2: #{tpu_custom_call.1} parent=1 // pred_check
      _
    $region3: #{tpu_custom_call.1} parent=1 // pred_check_branch
      %14 = sbr.rel (0) target = $region5
    $region4: #{tpu_custom_call.1} parent=1 // pred_region
      _
    $region5: #{tpu_custom_call.1} parent=1 // pred_fallthru
      _
    // Predicated region
    $region6: #{tpu_custom_call.1} parent=1 // pred_check
      _
    $region7: #{tpu_custom_call.1} parent=1 // pred_check_branch
      %16 = sbr.rel (0) target = $region9
    $region8: #{tpu_custom_call.1} parent=1 // pred_region
      _
    $region9: #{tpu_custom_call.1} parent=1 // pred_fallthru
      _
    // Predicated region
    $region10: #{tpu_custom_call.1} parent=1 // pred_check
      _
    $region11: #{tpu_custom_call.1} parent=1 // pred_check_branch
      %18 = sbr.rel (0) target = $region13
    $region12: #{tpu_custom_call.1} parent=1 // pred_region
      _
    $region13: #{tpu_custom_call.1} parent=1 // pred_fallthru
      _
    // Predicated region
    $region14: #{tpu_custom_call.1} parent=1 // pred_check
      _
    $region15: #{tpu_custom_call.1} parent=1 // pred_check_branch
      %20 = sbr.rel (0) target = $region17
    $region16: #{tpu_custom_call.1} parent=1 // pred_region
      _
    $region17: #{tpu_custom_call.1} parent=1 // pred_fallthru
      _
    // Predicated region
    $region18: #{tpu_custom_call.1} parent=1 // pred_check
      _
    $region19: #{tpu_custom_call.1} parent=1 // pred_check_branch
      %22 = sbr.rel (0) target = $region21
    $region20: #{tpu_custom_call.1} parent=1 // pred_region
      _
    $region21: #{tpu_custom_call.1} parent=1 // pred_fallthru
      _
    // Predicated region
    $region22: #{tpu_custom_call.1} parent=1 // pred_check
      _
    $region23: #{tpu_custom_call.1} parent=1 // pred_check_branch
      %24 = sbr.rel (0) target = $region25
    $region24: #{tpu_custom_call.1} parent=1 // pred_region
      _
    $region25: #{tpu_custom_call.1} parent=1 // pred_fallthru
      _
    // Predicated region
    $region26: #{tpu_custom_call.1} parent=1 // pred_check
      _
    $region27: #{tpu_custom_call.1} parent=1 // pred_check_branch
      %26 = sbr.rel (0) target = $region29
    $region28: #{tpu_custom_call.1} parent=1 // pred_region
      _
    $region29: #{tpu_custom_call.1} parent=1 // pred_fallthru
      _
    %v28 = vld [vmem:[%s0] sm:$0xff]
    %v29 = vld [vmem:[%s0 + $0x8] sm:$0x3f]
    %v30 = vld [vmem:[%s0 + $0xe] sm:$0xff]
    %v31 = vld [vmem:[%s0 + $0x16] sm:$0x3f]
    %v32 = vld [vmem:[%s0 + $0x1c] sm:$0xff]
    %v33 = vld [vmem:[%s0 + $0x24] sm:$0x3f]
    %v34 = vld [vmem:[%s0 + $0x2a] sm:$0xff]
    %v35 = vld [vmem:[%s0 + $0x32] sm:$0x3f]
    %v44 = vcombine.low %v28, %v30
    %v45 = vcombine.high %v28, %v30
    %v46 = vcombine.low %v32, %v34
    %v47 = vcombine.high %v32, %v34
    %v49 = vunpack.c.l.s4 1983009808
    %v50 = vunpack.c.0.s8 %v49
    %v51 = vlaneseq
    %v52 = vshrl.u32 %v51, 7
    %v53 = vsub.s32 %v50, %v52
    %v54 = vrot.slane %v44, %v53
    %v56 = vunpack.c.l.s4 1983009808
    %v57 = vunpack.c.0.s8 %v56
    %v58 = vlaneseq
    %v59 = vshrl.u32 %v58, 7
    %v60 = vsub.s32 %v57, %v59
    %v61 = vrot.slane %v45, %v60
    %v63 = vunpack.c.l.s4 1983009808
    %v64 = vunpack.c.0.s8 %v63
    %v65 = vlaneseq
    %v66 = vshrl.u32 %v65, 7
    %v67 = vsub.s32 %v64, %v66
    %v68 = vrot.slane %v46, %v67
    %v70 = vunpack.c.l.s4 1983009808
    %v71 = vunpack.c.0.s8 %v70
    %v72 = vlaneseq
    %v73 = vshrl.u32 %v72, 7
    %v74 = vsub.s32 %v71, %v73
    %v75 = vrot.slane %v47, %v74
    %v76 = vcombine.low %v54, %v68
    %v77 = vcombine.high %v54, %v68
    %v78 = vcombine.low %v61, %v75
    %v79 = vcombine.high %v61, %v75
    %v80 = vcombine.low %v29, %v31
    %v81 = vcombine.high %v29, %v31
    %v82 = vcombine.low %v33, %v35
    %v83 = vcombine.high %v33, %v35
    %v85 = vunpack.c.l.s4 1983009808
    %v86 = vunpack.c.0.s8 %v85
    %v87 = vlaneseq
    %v88 = vshrl.u32 %v87, 7
    %v89 = vsub.s32 %v86, %v88
    %v90 = vrot.slane %v80, %v89
    %v92 = vunpack.c.l.s4 1983009808
    %v93 = vunpack.c.0.s8 %v92
    %v94 = vlaneseq
    %v95 = vshrl.u32 %v94, 7
    %v96 = vsub.s32 %v93, %v95
    %v97 = vrot.slane %v81, %v96
    %v99 = vunpack.c.l.s4 1983009808
    %v100 = vunpack.c.0.s8 %v99
    %v101 = vlaneseq
    %v102 = vshrl.u32 %v101, 7
    %v103 = vsub.s32 %v100, %v102
    %v104 = vrot.slane %v82, %v103
    %v106 = vunpack.c.l.s4 1983009808
    %v107 = vunpack.c.0.s8 %v106
    %v108 = vlaneseq
    %v109 = vshrl.u32 %v108, 7
    %v110 = vsub.s32 %v107, %v109
    %v111 = vrot.slane %v83, %v110
    %v112 = vcombine.low %v90, %v104
    %v113 = vcombine.high %v90, %v104
    %v114 = vcombine.low %v97, %v111
    %v122 = vpack.c.bf16 %v76, %v76
    %v123 = vpack.c.bf16 %v77, %v77
    %v124 = vpack.c.bf16 %v78, %v78
    %v125 = vpack.c.bf16 %v79, %v79
    %v126 = vpack.c.bf16 %v112, %v112
    %v127 = vpack.c.bf16 %v113, %v113
    %v128 = vpack.c.bf16 %v114, %v114
    %v129 = vld [vmem:[%s1] sm:$0xf]
    %v130 = vld [vmem:[%s1 + $0x4] sm:$0xf]
    %v131 = vld [vmem:[%s1 + $0x8] sm:$0xf]
    %v132 = vld [vmem:[%s1 + $0xc] sm:$0xf]
    %v133 = vld [vmem:[%s1 + $0x10] sm:$0xf]
    %v134 = vld [vmem:[%s1 + $0x14] sm:$0xf]
    %v135 = vld [vmem:[%s1 + $0x18] sm:$0xf]
    %v136 = vld [vmem:[%s1 + $0x1c] sm:$0xf]
    %v137 = vld [vmem:[%s1 + $0x20] sm:$0xf]
    %v138 = vld [vmem:[%s1 + $0x24] sm:$0xf]
    %v139 = vld [vmem:[%s1 + $0x28] sm:$0xf]
    %v140 = vld [vmem:[%s1 + $0x2c] sm:$0xf]
    %v141 = vld [vmem:[%s1 + $0x30] sm:$0xf]
    %v142 = vld [vmem:[%s1 + $0x34] sm:$0xf]
    %v143 = vld [vmem:[%s1 + $0x38] sm:$0xf]
    %v144 = vld [vmem:[%s1 + $0x3c] sm:$0xf]
    %v145 = vld [vmem:[%s1 + $0x40] sm:$0xf]
    %v146 = vld [vmem:[%s1 + $0x44] sm:$0xf]
    %v147 = vld [vmem:[%s1 + $0x48] sm:$0xf]
    %v148 = vld [vmem:[%s1 + $0x4c] sm:$0xf]
    %v149 = vld [vmem:[%s1 + $0x50] sm:$0xf]
    %v150 = vld [vmem:[%s1 + $0x54] sm:$0xf]
    %v151 = vld [vmem:[%s1 + $0x58] sm:$0xf]
    %v152 = vld [vmem:[%s1 + $0x5c] sm:$0xf]
    %v153 = vld [vmem:[%s1 + $0x60] sm:$0xf]
    %v154 = vld [vmem:[%s1 + $0x64] sm:$0xf]
    %v155 = vld [vmem:[%s1 + $0x68] sm:$0xf]
    %v156 = vld [vmem:[%s1 + $0x6c] sm:$0xf]
    %v157 = vld [vmem:[%s1 + $0x70] sm:$0xf]
    %v158 = vld [vmem:[%s1 + $0x74] sm:$0xf]
    %v159 = vld [vmem:[%s1 + $0x78] sm:$0xf]
    %v160 = vld [vmem:[%s1 + $0x7c] sm:$0xf]
    %v161 = vld [vmem:[%s1 + $0x80] sm:$0xf]
    %v162 = vld [vmem:[%s1 + $0x84] sm:$0xf]
    %v163 = vld [vmem:[%s1 + $0x88] sm:$0xf]
    %v164 = vld [vmem:[%s1 + $0x8c] sm:$0xf]
    %v165 = vld [vmem:[%s1 + $0x90] sm:$0xf]
    %v166 = vld [vmem:[%s1 + $0x94] sm:$0xf]
    %v167 = vld [vmem:[%s1 + $0x98] sm:$0xf]
    %v168 = vld [vmem:[%s1 + $0x9c] sm:$0xf]
    %v169 = vld [vmem:[%s1 + $0xa0] sm:$0xf]
    %v170 = vld [vmem:[%s1 + $0xa4] sm:$0xf]
    %v171 = vld [vmem:[%s1 + $0xa8] sm:$0xf]
    %v172 = vld [vmem:[%s1 + $0xac] sm:$0xf]
    %v173 = vld [vmem:[%s1 + $0xb0] sm:$0xf]
    %v174 = vld [vmem:[%s1 + $0xb4] sm:$0xf]
    %v175 = vld [vmem:[%s1 + $0xb8] sm:$0xf]
    %v176 = vld [vmem:[%s1 + $0xbc] sm:$0xf]
    %v177 = vld [vmem:[%s1 + $0xc0] sm:$0xf]
    %v178 = vld [vmem:[%s1 + $0xc4] sm:$0xf]
    %v179 = vld [vmem:[%s1 + $0xc8] sm:$0xf]
    %v180 = vld [vmem:[%s1 + $0xcc] sm:$0xf]
    %v181 = vld [vmem:[%s1 + $0xd0] sm:$0xf]
    %v182 = vld [vmem:[%s1 + $0xd4] sm:$0xf]
    %v183 = vld [vmem:[%s1 + $0xd8] sm:$0xf]
    %v184 = vld [vmem:[%s1 + $0xdc] sm:$0xf]
    %v185 = vld [vmem:[%s1 + $0xe0] sm:$0xf]
    %v186 = vld [vmem:[%s1 + $0xe4] sm:$0xf]
    %v187 = vld [vmem:[%s1 + $0xe8] sm:$0xf]
    %v188 = vld [vmem:[%s1 + $0xec] sm:$0xf]
    %v189 = vld [vmem:[%s1 + $0xf0] sm:$0xf]
    %v190 = vld [vmem:[%s1 + $0xf4] sm:$0xf]
    %v191 = vld [vmem:[%s1 + $0xf8] sm:$0xf]
    %v192 = vld [vmem:[%s1 + $0xfc] sm:$0xf]
    %v193 = vld [vmem:[%s1 + $0x100] sm:$0xf]
    %v194 = vld [vmem:[%s1 + $0x104] sm:$0xf]
    %v195 = vld [vmem:[%s1 + $0x108] sm:$0xf]
    %v196 = vld [vmem:[%s1 + $0x10c] sm:$0xf]
    %v197 = vld [vmem:[%s1 + $0x110] sm:$0xf]
    %v198 = vld [vmem:[%s1 + $0x114] sm:$0xf]
    %v199 = vld [vmem:[%s1 + $0x118] sm:$0xf]
    %v200 = vld [vmem:[%s1 + $0x11c] sm:$0xf]
    %v201 = vld [vmem:[%s1 + $0x120] sm:$0xf]
    %v202 = vld [vmem:[%s1 + $0x124] sm:$0xf]
    %v203 = vld [vmem:[%s1 + $0x128] sm:$0xf]
    %v204 = vld [vmem:[%s1 + $0x12c] sm:$0xf]
    %v205 = vld [vmem:[%s1 + $0x130] sm:$0xf]
    %v206 = vld [vmem:[%s1 + $0x134] sm:$0xf]
    %v207 = vld [vmem:[%s1 + $0x138] sm:$0xf]
    %v208 = vld [vmem:[%s1 + $0x13c] sm:$0xf]
    %v209 = vld [vmem:[%s1 + $0x140] sm:$0xf]
    %v210 = vld [vmem:[%s1 + $0x144] sm:$0xf]
    %v211 = vld [vmem:[%s1 + $0x148] sm:$0xf]
    %v212 = vld [vmem:[%s1 + $0x14c] sm:$0xf]
    %v213 = vld [vmem:[%s1 + $0x150] sm:$0xf]
    %v214 = vld [vmem:[%s1 + $0x154] sm:$0xf]
    %v215 = vld [vmem:[%s1 + $0x158] sm:$0xf]
    %v216 = vld [vmem:[%s1 + $0x15c] sm:$0xf]
    %v217 = vld [vmem:[%s1 + $0x160] sm:$0xf]
    %v218 = vld [vmem:[%s1 + $0x164] sm:$0xf]
    %v219 = vld [vmem:[%s1 + $0x168] sm:$0xf]
    %v220 = vld [vmem:[%s1 + $0x16c] sm:$0xf]
    %v221 = vld [vmem:[%s1 + $0x170] sm:$0xf]
    %v222 = vld [vmem:[%s1 + $0x174] sm:$0xf]
    %v223 = vld [vmem:[%s1 + $0x178] sm:$0xf]
    %v224 = vld [vmem:[%s1 + $0x17c] sm:$0xf]
    %v225 = vld [vmem:[%s1 + $0x180] sm:$0xf]
    %v226 = vld [vmem:[%s1 + $0x184] sm:$0xf]
    %v227 = vld [vmem:[%s2] sm:$0x1]
    %v229 = vlaneseq
    %v230 = vshrl.u32 %v229, 7
    %v231 = vsub.s32 0, %v230
    %v232 = vrot.slane %v227, %v231
    %v332 = vunpack.c.l.b16 %v129
    %v333 = vunpack.c.l.b16 %v130
    %v334 = vunpack.c.l.b16 %v131
    %v335 = vunpack.c.l.b16 %v132
    %v336 = vunpack.c.l.b16 %v133
    %v337 = vunpack.c.l.b16 %v134
    %v338 = vunpack.c.l.b16 %v135
    %v339 = vunpack.c.l.b16 %v136
    %v340 = vunpack.c.l.b16 %v137
    %v341 = vunpack.c.l.b16 %v138
    %v342 = vunpack.c.l.b16 %v139
    %v343 = vunpack.c.l.b16 %v140
    %v344 = vunpack.c.l.b16 %v141
    %v345 = vunpack.c.l.b16 %v142
    %v346 = vunpack.c.l.b16 %v143
    %v347 = vunpack.c.l.b16 %v144
    %v348 = vunpack.c.l.b16 %v145
    %v349 = vunpack.c.l.b16 %v146
    %v350 = vunpack.c.l.b16 %v147
    %v351 = vunpack.c.l.b16 %v148
    %v352 = vunpack.c.l.b16 %v149
    %v353 = vunpack.c.l.b16 %v150
    %v354 = vunpack.c.l.b16 %v151
    %v355 = vunpack.c.l.b16 %v152
    %v356 = vunpack.c.l.b16 %v153
    %v357 = vunpack.c.l.b16 %v154
    %v358 = vunpack.c.l.b16 %v155
    %v359 = vunpack.c.l.b16 %v156
    %v360 = vunpack.c.l.b16 %v157
    %v361 = vunpack.c.l.b16 %v158
    %v362 = vunpack.c.l.b16 %v159
    %v363 = vunpack.c.l.b16 %v160
    %v364 = vunpack.c.l.b16 %v161
    %v365 = vunpack.c.l.b16 %v162
    %v366 = vunpack.c.l.b16 %v163
    %v367 = vunpack.c.l.b16 %v164
    %v368 = vunpack.c.l.b16 %v165
    %v369 = vunpack.c.l.b16 %v166
    %v370 = vunpack.c.l.b16 %v167
    %v371 = vunpack.c.l.b16 %v168
    %v372 = vunpack.c.l.b16 %v169
    %v373 = vunpack.c.l.b16 %v170
    %v374 = vunpack.c.l.b16 %v171
    %v375 = vunpack.c.l.b16 %v172
    %v376 = vunpack.c.l.b16 %v173
    %v377 = vunpack.c.l.b16 %v174
    %v378 = vunpack.c.l.b16 %v175
    %v379 = vunpack.c.l.b16 %v176
    %v380 = vunpack.c.l.b16 %v177
    %v381 = vunpack.c.l.b16 %v178
    %v382 = vunpack.c.l.b16 %v179
    %v383 = vunpack.c.l.b16 %v180
    %v384 = vunpack.c.l.b16 %v181
    %v385 = vunpack.c.l.b16 %v182
    %v386 = vunpack.c.l.b16 %v183
    %v387 = vunpack.c.l.b16 %v184
    %v388 = vunpack.c.l.b16 %v185
    %v389 = vunpack.c.l.b16 %v186
    %v390 = vunpack.c.l.b16 %v187
    %v391 = vunpack.c.l.b16 %v188
    %v392 = vunpack.c.l.b16 %v189
    %v393 = vunpack.c.l.b16 %v190
    %v394 = vunpack.c.l.b16 %v191
    %v395 = vunpack.c.l.b16 %v192
    %v396 = vunpack.c.l.b16 %v193
    %v397 = vunpack.c.l.b16 %v194
    %v398 = vunpack.c.l.b16 %v195
    %v399 = vunpack.c.l.b16 %v196
    %v400 = vunpack.c.l.b16 %v197
    %v401 = vunpack.c.l.b16 %v198
    %v402 = vunpack.c.l.b16 %v199
    %v403 = vunpack.c.l.b16 %v200
    %v404 = vunpack.c.l.b16 %v201
    %v405 = vunpack.c.l.b16 %v202
    %v406 = vunpack.c.l.b16 %v203
    %v407 = vunpack.c.l.b16 %v204
    %v408 = vunpack.c.l.b16 %v205
    %v409 = vunpack.c.l.b16 %v206
    %v410 = vunpack.c.l.b16 %v207
    %v411 = vunpack.c.l.b16 %v208
    %v412 = vunpack.c.l.b16 %v209
    %v413 = vunpack.c.l.b16 %v210
    %v414 = vunpack.c.l.b16 %v211
    %v415 = vunpack.c.l.b16 %v212
    %v416 = vunpack.c.l.b16 %v213
    %v417 = vunpack.c.l.b16 %v214
    %v418 = vunpack.c.l.b16 %v215
    %v419 = vunpack.c.l.b16 %v216
    %v420 = vunpack.c.l.b16 %v217
    %v421 = vunpack.c.l.b16 %v218
    %v422 = vunpack.c.l.b16 %v219
    %v423 = vunpack.c.l.b16 %v220
    %v424 = vunpack.c.l.b16 %v221
    %v425 = vunpack.c.l.b16 %v222
    %v426 = vunpack.c.l.b16 %v223
    %v427 = vunpack.c.l.b16 %v224
    %v428 = vunpack.c.l.b16 %v225
    %v429 = vunpack.c.l.b16 %v226
    %v430 = vpack.c.b16 %v333, %v332
    %v431 = vpack.c.b16 %v335, %v334
    %v432 = vpack.c.b16 %v337, %v336
    %v433 = vpack.c.b16 %v339, %v338
    %v434 = vpack.c.b16 %v341, %v340
    %v435 = vpack.c.b16 %v343, %v342
    %v436 = vpack.c.b16 %v345, %v344
    %v437 = vpack.c.b16 %v347, %v346
    %v438 = vpack.c.b16 %v349, %v348
    %v439 = vpack.c.b16 %v351, %v350
    %v440 = vpack.c.b16 %v353, %v352
    %v441 = vpack.c.b16 %v355, %v354
    %v442 = vpack.c.b16 %v357, %v356
    %v443 = vpack.c.b16 %v359, %v358
    %v444 = vpack.c.b16 %v361, %v360
    %v445 = vpack.c.b16 %v363, %v362
    %v446 = vpack.c.b16 %v365, %v364
    %v447 = vpack.c.b16 %v367, %v366
    %v448 = vpack.c.b16 %v369, %v368
    %v449 = vpack.c.b16 %v371, %v370
    %v450 = vpack.c.b16 %v373, %v372
    %v451 = vpack.c.b16 %v375, %v374
    %v452 = vpack.c.b16 %v377, %v376
    %v453 = vpack.c.b16 %v379, %v378
    %v454 = vpack.c.b16 %v381, %v380
    %v455 = vpack.c.b16 %v383, %v382
    %v456 = vpack.c.b16 %v385, %v384
    %v457 = vpack.c.b16 %v387, %v386
    %v458 = vpack.c.b16 %v389, %v388
    %v459 = vpack.c.b16 %v391, %v390
    %v460 = vpack.c.b16 %v393, %v392
    %v461 = vpack.c.b16 %v395, %v394
    %v462 = vpack.c.b16 %v397, %v396
    %v463 = vpack.c.b16 %v399, %v398
    %v464 = vpack.c.b16 %v401, %v400
    %v465 = vpack.c.b16 %v403, %v402
    %v466 = vpack.c.b16 %v405, %v404
    %v467 = vpack.c.b16 %v407, %v406
    %v468 = vpack.c.b16 %v409, %v408
    %v469 = vpack.c.b16 %v411, %v410
    %v470 = vpack.c.b16 %v413, %v412
    %v471 = vpack.c.b16 %v415, %v414
    %v472 = vpack.c.b16 %v417, %v416
    %v473 = vpack.c.b16 %v419, %v418
    %v474 = vpack.c.b16 %v421, %v420
    %v475 = vpack.c.b16 %v423, %v422
    %v476 = vpack.c.b16 %v425, %v424
    %v477 = vpack.c.b16 %v427, %v426
    %v478 = vpack.c.b16 %v429, %v428
    %vm528 = vcmask 130048
    %v530 = vsel %vm528, %v128, 0
    %532 = vmatprep.subr.bf16.mxu0 0
    %533 = vmatpush1.bf16.msra.mxu0 %v430
    %534 = vmatprep.subr.bf16.mxu0 0
    %535 = vmatpush1.bf16.msra.mxu0 %v431
    %536 = vmatprep.subr.bf16.mxu0 0
    %537 = vmatpush1.bf16.msra.mxu0 %v432
    %538 = vmatprep.subr.bf16.mxu0 0
    %539 = vmatpush1.bf16.msra.mxu0 %v433
    %540 = vmatprep.subr.bf16.mxu0 0
    %541 = vmatpush1.bf16.msra.mxu0 %v434
    %542 = vmatprep.subr.bf16.mxu0 0
    %543 = vmatpush1.bf16.msra.mxu0 %v435
    %544 = vmatprep.subr.bf16.mxu0 0
    %545 = vmatpush1.bf16.msra.mxu0 %v436
    %546 = vmatprep.subr.bf16.mxu0 0
    %547 = vmatpush1.bf16.msra.mxu0 %v437
    %548 = vmatprep.subr.bf16.mxu0 0
    %549 = vmatpush1.bf16.msra.mxu0 %v438
    %550 = vmatprep.subr.bf16.mxu0 0
    %551 = vmatpush1.bf16.msra.mxu0 %v439
    %552 = vmatprep.subr.bf16.mxu0 0
    %553 = vmatpush1.bf16.msra.mxu0 %v440
    %554 = vmatprep.subr.bf16.mxu0 0
    %555 = vmatpush1.bf16.msra.mxu0 %v441
    %556 = vmatprep.subr.bf16.mxu0 0
    %557 = vmatpush1.bf16.msra.mxu0 %v442
    %558 = vmatprep.subr.bf16.mxu0 0
    %559 = vmatpush1.bf16.msra.mxu0 %v443
    %560 = vmatprep.subr.bf16.mxu0 0
    %561 = vmatpush1.bf16.msra.mxu0 %v444
    %562 = vmatprep.subr.bf16.mxu0 0
    %563 = vmatpush1.bf16.msra.mxu0 %v445
    %564 = vmatprep.mubr.bf16.mxu0 %v123
    %565 = vmatmul.mubr.bf16.gmra.mrb[0].mxu0 %v122
    %v566 = vpop.f32.mrb[0].mxu0
    %v567 = vadd.f32 %v232, %v566
    %v568 = vpop.f32.mrb[0].mxu0
    %v569 = vpop.f32.mrb[0].mxu0
    %v570 = vpop.f32.mrb[0].mxu0
    %571 = vdwg.mxu0
    %572 = vmatprep.subr.bf16.mxu0 0
    %573 = vmatpush1.bf16.msra.mxu0 %v446
    %574 = vmatprep.subr.bf16.mxu0 0
    %575 = vmatpush1.bf16.msra.mxu0 %v447
    %576 = vmatprep.subr.bf16.mxu0 0
    %577 = vmatpush1.bf16.msra.mxu0 %v448
    %578 = vmatprep.subr.bf16.mxu0 0
    %579 = vmatpush1.bf16.msra.mxu0 %v449
    %580 = vmatprep.subr.bf16.mxu0 0
    %581 = vmatpush1.bf16.msra.mxu0 %v450
    %582 = vmatprep.subr.bf16.mxu0 0
    %583 = vmatpush1.bf16.msra.mxu0 %v451
    %584 = vmatprep.subr.bf16.mxu0 0
    %585 = vmatpush1.bf16.msra.mxu0 %v452
    %586 = vmatprep.subr.bf16.mxu0 0
    %587 = vmatpush1.bf16.msra.mxu0 %v453
    %588 = vmatprep.subr.bf16.mxu0 0
    %589 = vmatpush1.bf16.msra.mxu0 %v454
    %590 = vmatprep.subr.bf16.mxu0 0
    %591 = vmatpush1.bf16.msra.mxu0 %v455
    %592 = vmatprep.subr.bf16.mxu0 0
    %593 = vmatpush1.bf16.msra.mxu0 %v456
    %594 = vmatprep.subr.bf16.mxu0 0
    %595 = vmatpush1.bf16.msra.mxu0 %v457
    %596 = vmatprep.subr.bf16.mxu0 0
    %597 = vmatpush1.bf16.msra.mxu0 %v458
    %598 = vmatprep.subr.bf16.mxu0 0
    %599 = vmatpush1.bf16.msra.mxu0 %v459
    %600 = vmatprep.subr.bf16.mxu0 0
    %601 = vmatpush1.bf16.msra.mxu0 %v460
    %602 = vmatprep.subr.bf16.mxu0 0
    %603 = vmatpush1.bf16.msra.mxu0 %v461
    %604 = vmatprep.mubr.bf16.mxu0 %v125
    %605 = vmatmul.mubr.bf16.gmra.mrb[0].mxu0 %v124
    %v606 = vpop.f32.mrb[0].mxu0
    %v607 = vadd.f32 %v567, %v606
    %v608 = vpop.f32.mrb[0].mxu0
    %v609 = vpop.f32.mrb[0].mxu0
    %v610 = vpop.f32.mrb[0].mxu0
    %611 = vdwg.mxu0
    %612 = vmatprep.subr.bf16.mxu0 0
    %613 = vmatpush1.bf16.msra.mxu0 %v462
    %614 = vmatprep.subr.bf16.mxu0 0
    %615 = vmatpush1.bf16.msra.mxu0 %v463
    %616 = vmatprep.subr.bf16.mxu0 0
    %617 = vmatpush1.bf16.msra.mxu0 %v464
    %618 = vmatprep.subr.bf16.mxu0 0
    %619 = vmatpush1.bf16.msra.mxu0 %v465
    %620 = vmatprep.subr.bf16.mxu0 0
    %621 = vmatpush1.bf16.msra.mxu0 %v466
    %622 = vmatprep.subr.bf16.mxu0 0
    %623 = vmatpush1.bf16.msra.mxu0 %v467
    %624 = vmatprep.subr.bf16.mxu0 0
    %625 = vmatpush1.bf16.msra.mxu0 %v468
    %626 = vmatprep.subr.bf16.mxu0 0
    %627 = vmatpush1.bf16.msra.mxu0 %v469
    %628 = vmatprep.subr.bf16.mxu0 0
    %629 = vmatpush1.bf16.msra.mxu0 %v470
    %630 = vmatprep.subr.bf16.mxu0 0
    %631 = vmatpush1.bf16.msra.mxu0 %v471
    %632 = vmatprep.subr.bf16.mxu0 0
    %633 = vmatpush1.bf16.msra.mxu0 %v472
    %634 = vmatprep.subr.bf16.mxu0 0
    %635 = vmatpush1.bf16.msra.mxu0 %v473
    %636 = vmatprep.subr.bf16.mxu0 0
    %637 = vmatpush1.bf16.msra.mxu0 %v474
    %638 = vmatprep.subr.bf16.mxu0 0
    %639 = vmatpush1.bf16.msra.mxu0 %v475
    %640 = vmatprep.subr.bf16.mxu0 0
    %641 = vmatpush1.bf16.msra.mxu0 %v476
    %642 = vmatprep.subr.bf16.mxu0 0
    %643 = vmatpush1.bf16.msra.mxu0 %v477
    %644 = vmatprep.mubr.bf16.mxu0 %v127
    %645 = vmatmul.mubr.bf16.gmra.mrb[0].mxu0 %v126
    %v646 = vpop.f32.mrb[0].mxu0
    %v647 = vadd.f32 %v607, %v646
    %v648 = vpop.f32.mrb[0].mxu0
    %v649 = vpop.f32.mrb[0].mxu0
    %v650 = vpop.f32.mrb[0].mxu0
    %651 = vdwg.mxu0
    %652 = vmatprep.subr.bf16.mxu0 0
    %653 = vmatpush1.bf16.msra.mxu0 %v478
    %654 = vmatprep.subr.bf16.mxu0 0
    %655 = vmatpush1.bf16.msra.mxu0 0
    %656 = vmatprep.subr.bf16.mxu0 0
    %657 = vmatpush1.bf16.msra.mxu0 0
    %658 = vmatprep.subr.bf16.mxu0 0
    %659 = vmatpush1.bf16.msra.mxu0 0
    %660 = vmatprep.subr.bf16.mxu0 0
    %661 = vmatpush1.bf16.msra.mxu0 0
    %662 = vmatprep.subr.bf16.mxu0 0
    %663 = vmatpush1.bf16.msra.mxu0 0
    %664 = vmatprep.subr.bf16.mxu0 0
    %665 = vmatpush1.bf16.msra.mxu0 0
    %666 = vmatprep.subr.bf16.mxu0 0
    %667 = vmatpush1.bf16.msra.mxu0 0
    %668 = vmatprep.subr.bf16.mxu0 0
    %669 = vmatpush1.bf16.msra.mxu0 0
    %670 = vmatprep.subr.bf16.mxu0 0
    %671 = vmatpush1.bf16.msra.mxu0 0
    %672 = vmatprep.subr.bf16.mxu0 0
    %673 = vmatpush1.bf16.msra.mxu0 0
    %674 = vmatprep.subr.bf16.mxu0 0
    %675 = vmatpush1.bf16.msra.mxu0 0
    %676 = vmatprep.subr.bf16.mxu0 0
    %677 = vmatpush1.bf16.msra.mxu0 0
    %678 = vmatprep.subr.bf16.mxu0 0
    %679 = vmatpush1.bf16.msra.mxu0 0
    %680 = vmatprep.subr.bf16.mxu0 0
    %681 = vmatpush1.bf16.msra.mxu0 0
    %682 = vmatprep.subr.bf16.mxu0 0
    %683 = vmatpush1.bf16.msra.mxu0 0
    %684 = vmatprep.mubr.bf16.mxu0 0
    %685 = vmatmul.mubr.bf16.gmra.mrb[0].mxu0 %v530
    %v686 = vpop.f32.mrb[0].mxu0
    %v687 = vadd.f32 %v647, %v686
    %v688 = vpop.f32.mrb[0].mxu0
    %v689 = vpop.f32.mrb[0].mxu0
    %v690 = vpop.f32.mrb[0].mxu0
    %691 = vdwg.mxu0
    %v692 = vmax.f32 %v687, 0.0
    %v693 = vpack.c.bf16 %v692, %v692
    %v694 = vld [vmem:[%s3] sm:$0xf]
    %v695 = vld [vmem:[%s3 + $0x4] sm:$0xf]
    %v696 = vld [vmem:[%s3 + $0x8] sm:$0xf]
    %v697 = vld [vmem:[%s3 + $0xc] sm:$0xf]
    %v698 = vld [vmem:[%s3 + $0x10] sm:$0xf]
    %v699 = vld [vmem:[%s3 + $0x14] sm:$0xf]
    %v700 = vld [vmem:[%s3 + $0x18] sm:$0xf]
    %v701 = vld [vmem:[%s3 + $0x1c] sm:$0xf]
    %v702 = vld [vmem:[%s4] sm:$0x1]
    %v704 = vlaneseq
    %v705 = vshrl.u32 %v704, 7
    %v706 = vsub.s32 0, %v705
    %v707 = vrot.slane %v702, %v706
    %v717 = vunpack.c.l.b16 %v694
    %v718 = vunpack.c.l.b16 %v695
    %v719 = vunpack.c.l.b16 %v696
    %v720 = vunpack.c.l.b16 %v697
    %v721 = vunpack.c.l.b16 %v698
    %v722 = vunpack.c.l.b16 %v699
    %v723 = vunpack.c.l.b16 %v700
    %v724 = vunpack.c.l.b16 %v701
    %v725 = vpack.c.b16 %v718, %v717
    %v726 = vpack.c.b16 %v720, %v719
    %v727 = vpack.c.b16 %v722, %v721
    %v728 = vpack.c.b16 %v724, %v723
    %vm733 = vcmask 523264
    %v735 = vsel %vm733, %v693, 0
    %737 = vmatprep.subr.bf16.mxu0 0
    %738 = vmatpush1.bf16.msra.mxu0 %v725
    %739 = vmatprep.subr.bf16.mxu0 0
    %740 = vmatpush1.bf16.msra.mxu0 %v726
    %741 = vmatprep.subr.bf16.mxu0 0
    %742 = vmatpush1.bf16.msra.mxu0 %v727
    %743 = vmatprep.subr.bf16.mxu0 0
    %744 = vmatpush1.bf16.msra.mxu0 %v728
    %745 = vmatprep.subr.bf16.mxu0 0
    %746 = vmatpush1.bf16.msra.mxu0 0
    %747 = vmatprep.subr.bf16.mxu0 0
    %748 = vmatpush1.bf16.msra.mxu0 0
    %749 = vmatprep.subr.bf16.mxu0 0
    %750 = vmatpush1.bf16.msra.mxu0 0
    %751 = vmatprep.subr.bf16.mxu0 0
    %752 = vmatpush1.bf16.msra.mxu0 0
    %753 = vmatprep.subr.bf16.mxu0 0
    %754 = vmatpush1.bf16.msra.mxu0 0
    %755 = vmatprep.subr.bf16.mxu0 0
    %756 = vmatpush1.bf16.msra.mxu0 0
    %757 = vmatprep.subr.bf16.mxu0 0
    %758 = vmatpush1.bf16.msra.mxu0 0
    %759 = vmatprep.subr.bf16.mxu0 0
    %760 = vmatpush1.bf16.msra.mxu0 0
    %761 = vmatprep.subr.bf16.mxu0 0
    %762 = vmatpush1.bf16.msra.mxu0 0
    %763 = vmatprep.subr.bf16.mxu0 0
    %764 = vmatpush1.bf16.msra.mxu0 0
    %765 = vmatprep.subr.bf16.mxu0 0
    %766 = vmatpush1.bf16.msra.mxu0 0
    %767 = vmatprep.subr.bf16.mxu0 0
    %768 = vmatpush1.bf16.msra.mxu0 0
    %769 = vmatprep.mubr.bf16.mxu0 0
    %770 = vmatmul.mubr.bf16.gmra.mrb[0].mxu0 %v735
    %v771 = vpop.f32.mrb[0].mxu0
    %v772 = vadd.f32 %v707, %v771
    %v773 = vpop.f32.mrb[0].mxu0
    %v774 = vpop.f32.mrb[0].mxu0
    %v775 = vpop.f32.mrb[0].mxu0
    %776 = vdwg.mxu0
    %v777 = vmax.f32 %v772, 0.0
    %v778 = vpack.c.bf16 %v777, %v777
    %v779 = vld [vmem:[%s5] sm:$0xf]
    %v780 = vld [vmem:[%s5 + $0x4] sm:$0xf]
    %v781 = vld [vmem:[%s5 + $0x8] sm:$0xf]
    %v782 = vld [vmem:[%s5 + $0xc] sm:$0xf]
    %v783 = vld [vmem:[%s5 + $0x10] sm:$0xf]
    %v784 = vld [vmem:[%s5 + $0x14] sm:$0xf]
    %v785 = vld [vmem:[%s5 + $0x18] sm:$0xf]
    %v786 = vld [vmem:[%s5 + $0x1c] sm:$0xf]
    %v787 = vld [vmem:[%s6] sm:$0x1]
    %v789 = vlaneseq
    %v790 = vshrl.u32 %v789, 7
    %v791 = vsub.s32 0, %v790
    %v792 = vrot.slane %v787, %v791
    %v802 = vunpack.c.l.b16 %v779
    %v803 = vunpack.c.l.b16 %v780
    %v804 = vunpack.c.l.b16 %v781
    %v805 = vunpack.c.l.b16 %v782
    %v806 = vunpack.c.l.b16 %v783
    %v807 = vunpack.c.l.b16 %v784
    %v808 = vunpack.c.l.b16 %v785
    %v809 = vunpack.c.l.b16 %v786
    %v810 = vpack.c.b16 %v803, %v802
    %v811 = vpack.c.b16 %v805, %v804
    %v812 = vpack.c.b16 %v807, %v806
    %v813 = vpack.c.b16 %v809, %v808
    %v819 = vsel %vm733, %v778, 0
    %821 = vmatprep.subr.bf16.mxu0 0
    %822 = vmatpush1.bf16.msra.mxu0 %v810
    %823 = vmatprep.subr.bf16.mxu0 0
    %824 = vmatpush1.bf16.msra.mxu0 %v811
    %825 = vmatprep.subr.bf16.mxu0 0
    %826 = vmatpush1.bf16.msra.mxu0 %v812
    %827 = vmatprep.subr.bf16.mxu0 0
    %828 = vmatpush1.bf16.msra.mxu0 %v813
    %829 = vmatprep.subr.bf16.mxu0 0
    %830 = vmatpush1.bf16.msra.mxu0 0
    %831 = vmatprep.subr.bf16.mxu0 0
    %832 = vmatpush1.bf16.msra.mxu0 0
    %833 = vmatprep.subr.bf16.mxu0 0
    %834 = vmatpush1.bf16.msra.mxu0 0
    %835 = vmatprep.subr.bf16.mxu0 0
    %836 = vmatpush1.bf16.msra.mxu0 0
    %837 = vmatprep.subr.bf16.mxu0 0
    %838 = vmatpush1.bf16.msra.mxu0 0
    %839 = vmatprep.subr.bf16.mxu0 0
    %840 = vmatpush1.bf16.msra.mxu0 0
    %841 = vmatprep.subr.bf16.mxu0 0
    %842 = vmatpush1.bf16.msra.mxu0 0
    %843 = vmatprep.subr.bf16.mxu0 0
    %844 = vmatpush1.bf16.msra.mxu0 0
    %845 = vmatprep.subr.bf16.mxu0 0
    %846 = vmatpush1.bf16.msra.mxu0 0
    %847 = vmatprep.subr.bf16.mxu0 0
    %848 = vmatpush1.bf16.msra.mxu0 0
    %849 = vmatprep.subr.bf16.mxu0 0
    %850 = vmatpush1.bf16.msra.mxu0 0
    %851 = vmatprep.subr.bf16.mxu0 0
    %852 = vmatpush1.bf16.msra.mxu0 0
    %853 = vmatprep.mubr.bf16.mxu0 0
    %854 = vmatmul.mubr.bf16.gmra.mrb[0].mxu0 %v819
    %v855 = vpop.f32.mrb[0].mxu0
    %v856 = vadd.f32 %v792, %v855
    %v857 = vpop.f32.mrb[0].mxu0
    %v858 = vpop.f32.mrb[0].mxu0
    %v859 = vpop.f32.mrb[0].mxu0
    %860 = vdwg.mxu0
    %v861 = vpack.c.bf16 %v856, %v856
    %v864 = vunpack.c.l.s4 1966171168
    %v865 = vunpack.c.0.s8 %v864
    %v866 = vlaneseq
    %v867 = vshrl.u32 %v866, 7
    %v868 = vsub.s32 %v865, %v867
    %v869 = vrot.slane %v861, %v868
    %v870 = vcombine.high %v869, %v869
    %v872 = vunpack.c.l.s4 1966171168
    %v873 = vunpack.c.0.s8 %v872
    %v874 = vlaneseq
    %v875 = vshrl.u32 %v874, 7
    %v876 = vsub.s32 %v873, %v875
    %v877 = vrot.slane %v869, %v876
    %v879 = vunpack.c.l.s4 1966171168
    %v880 = vunpack.c.0.s8 %v879
    %v881 = vlaneseq
    %v882 = vshrl.u32 %v881, 7
    %v883 = vsub.s32 %v880, %v882
    %v884 = vrot.slane %v870, %v883
    %v885 = vcombine.high %v877, %v877
    %v886 = vcombine.high %v884, %v884
    %891 = vst [vmem:[#allocation2] sm:$0x1] %v877
    %892 = vst [vmem:[#allocation2 + $0x1] sm:$0x1] %v884
    %893 = vst [vmem:[#allocation2 + $0x2] sm:$0x1] %v885
    %894 = vst [vmem:[#allocation2 + $0x3] sm:$0x1] %v886
    // Predicated region
    $region30: #{tpu_custom_call.1} parent=1 // pred_check
      _
    $region31: #{tpu_custom_call.1} parent=1 // pred_check_branch
      %896 = sbr.rel (0) target = $region33
    $region32: #{tpu_custom_call.1} parent=1 // pred_region
      %s898 = ssub.s32 64, 16
      %899 = vsyncadd [#allocation3], %s898
      %s900 = sshll.u32 [#allocation2], 4
      %s901 = int_to_ptr.vmem [resolvable:$true] %s900
      %906 = dma.vmem_to_hbm [thread:$0]  %s901, 16, %s7, [#allocation3], 16, 16, 1
    $region33: #{tpu_custom_call.1} parent=1 // pred_fallthru
      _
    // Predicated region
    $region34: #{tpu_custom_call.1} parent=1 // pred_check
      _
    $region35: #{tpu_custom_call.1} parent=1 // pred_check_branch
      %908 = sbr.rel (0) target = $region37
    $region36: #{tpu_custom_call.1} parent=1 // pred_region
      %909 = dma.done [#allocation3], 64
    $region37: #{tpu_custom_call.1} parent=1 // pred_fallthru
      _
    %910 = vsyncpa [#allocation3], 1

</llo_original>
